<compile_context>
chip_gen: v5e
topology: v5e:2x2
jax: 0.10.0
libtpu: 0.0.40
codegen_flags: <defaults>
</compile_context>

<pallas_src>
import jax
import jax.numpy as jnp
from jax.experimental import pallas as pl
from jax.experimental.pallas import tpu as pltpu


def _dma_copy_kernel(x_ref, o_ref, sem):
    # x_ref / o_ref are raw HBM refs (pl.ANY): one contiguous HBM->HBM DMA.
    cp = pltpu.make_async_copy(x_ref, o_ref, sem)
    cp.start()
    cp.wait()


def unpack(x, size):
    """Pallas implementation of Unpack.forward.

    x: (..., D) with D % size == 0.
    Returns an array of shape (*x.shape[:-1], D // size, size).
    """
    D = x.shape[-1]
    assert D % size == 0, "last dim must be divisible by size"
    lead = x.shape[:-1]
    M = 1
    for s in lead:
        M *= s
    total = M * D
    itemsize = jnp.dtype(x.dtype).itemsize

    # Lane-dense 2-D flattening of the contiguous buffer (pure metadata).
    # Layout barely matters for an HBM->HBM DMA, but a (rows, L) view with L a
    # multiple of 128 keeps the descriptor trivially contiguous; fall back to
    # the natural (M, D) view when total isn't a multiple of 128.
    if total % 128 == 0:
        L = 128
        while total % (L * 2) == 0 and L * 2 <= 1024:
            L *= 2
        rows = total // L
    else:
        L, rows = D, M
    x2d = x.reshape(rows, L)

    out2d = pl.pallas_call(
        _dma_copy_kernel,
        out_shape=jax.ShapeDtypeStruct((rows, L), x.dtype),
        in_specs=[pl.BlockSpec(memory_space=pl.ANY)],   # stay in HBM, no auto-DMA
        out_specs=pl.BlockSpec(memory_space=pl.ANY),
        scratch_shapes=[pltpu.SemaphoreType.DMA(())],
        cost_estimate=pl.CostEstimate(
            flops=0,
            transcendentals=0,
            bytes_accessed=2 * total * itemsize),
    )(x2d)

    # The unpack split itself is pure metadata (row-major reshape).
    return out2d.reshape(*lead, D // size, size)


if __name__ == "__main__":
    size = 4
    B, C, S, D = 2, 4, 16, 32        # x: (2, 4, 16, 32), D % size == 0

    key = jax.random.PRNGKey(0)
    x = jax.random.normal(key, (B, C, S, D), jnp.float32)

    out = unpack(x, size)
    out = jax.block_until_ready(out)

    # Pure-JAX reference (matches torch's x.reshape(*x.shape[:-1], D//size, size)).
    ref = x.reshape(B, C, S, D // size, size)

    assert out.shape == (B, C, S, D // size, size), out.shape
    assert jnp.array_equal(out, ref)
    print("KERNEL_OK")
</pallas_src>

<mosaic_0001>
module attributes {stable_mosaic.version = 11 : i64} {
  func.func @_dma_copy_kernel(%arg0: memref<4x1024xf32, #tpu.memory_space<any>>, %arg1: memref<4x1024xf32, #tpu.memory_space<any>>, %arg2: memref<!tpu.dma_semaphore, #tpu.memory_space<semaphore_mem>>) attributes {dimension_semantics = [], scalar_prefetch = 0 : i64, scratch_operands = 1 : i64, tpu.core_type = #tpu.core_type<tc>} {
    tpu.enqueue_dma source(%arg0 : memref<4x1024xf32, #tpu.memory_space<any>>) target(%arg1 : memref<4x1024xf32, #tpu.memory_space<any>>) target_semaphore(%arg2 : memref<!tpu.dma_semaphore, #tpu.memory_space<semaphore_mem>>)
    tpu.wait_dma2 semaphore(%arg2 : memref<!tpu.dma_semaphore, #tpu.memory_space<semaphore_mem>>) src(%arg0 : memref<4x1024xf32, #tpu.memory_space<any>>) dst(%arg1 : memref<4x1024xf32, #tpu.memory_space<any>>)
    return
  }
}

</mosaic_0001>

<llo_original>
// kernel: tpu_custom_call.1
$region0: #{tpu_custom_call.1}
  #allocation0 [shape = 'u32[]', space=smem, size = 0x4, offset = 0x4, fixed_abs, tag = 'smem constant byte address 0x4 - core index']
  #allocation1 [shape = 'u32[72,128]{1,0:T(1,128)}', space=vmem, size = 0x9000, scoped, tag = 'internal scratch']
  #allocation2 [shape = 's32[1]{0}', space=sflag, size = 0x4, scoped, tag = 'scratch operand']
  #allocation3 [shape = 's32[]', space=sflag, size = 0x4, offset = 0, fixed_abs, tag = 'sflag constant byte address 0x0 - dummy sync flag']
  #allocation4 [shape = 'u32[0]{0}', space=smem, size = 0, offset = 0, fixed_abs, tag = 'smem constant byte address 0x0 - null']
  %s0 = inlined_call_operand.hbm [shape: f32[4,1024], index: 0, kind: input, shape index: {}]
  %s1 = inlined_call_operand.hbm [shape: f32[4,1024], index: 1, kind: output, shape index: {}]
  %s2 = sld [smem:[#allocation0]]
  $region2: #{tpu_custom_call.1} parent=0
    _
  %s4 = ssub.s32 1, %s2
  %s5 = scalar_select 0, %s4, %s2
  %s7 = sshll.u32 1, 14
  %s8 = sxor.u32 4294967295, %s7
  %s10 = sshll.u32 %s0, 4
  %s11 = int_to_ptr.hbm [resolvable:$true] %s10
  %s12 = sshll.u32 %s1, 4
  %s13 = int_to_ptr.hbm [resolvable:$true] %s12
  %16 = dma.general %s11, 512, %s13, [#allocation2], [#allocation3], [#allocation4], 0, 0
  %s17 = smul.u32 4, 1
  %s18 = smul.u32 %s17, 8
  %s19 = sshll.u32 %s18, 4
  %20 = dma.done [#allocation2], %s19
  %21 = vsyncmov [#allocation2]
  %s22 = vpop.sfrf %21
  %p23 = scmp.eq.s32.totalorder %s22, 0
  %p24 = pneg %p23
  %26 = shalt.err (%p24)

</llo_original>
